<compile_context>
chip_gen: v7x
topology: tpu7x:2x2x1
jax: 0.10.0
libtpu: 0.0.40
codegen_flags: <defaults>
</compile_context>

<pallas_src>
import math
import functools

import jax
import jax.numpy as jnp
from jax.experimental import pallas as pl
from jax.experimental.pallas import tpu as pltpu


def _round_up(x, m):
    return ((x + m - 1) // m) * m


def _mlp_kernel(*refs, num_layers):
    """refs = (x_ref, w0, b0, w1, b1, ..., o_ref).

    h = x; for each layer: h = h @ W_i + b_i; out = sigmoid(h).
    Matmuls accumulate in f32 on the MXU; sigmoid runs on the EUP.
    """
    x_ref = refs[0]
    o_ref = refs[-1]
    params = refs[1:-1]

    h = x_ref[...]
    for i in range(num_layers):
        w = params[2 * i][...]
        b = params[2 * i + 1][...]
        if w.dtype == jnp.bfloat16:
            h = h.astype(jnp.bfloat16)
        h = jnp.dot(h, w, preferred_element_type=jnp.float32) + b
    o_ref[...] = jax.nn.sigmoid(h).astype(o_ref.dtype)


def _choose_batch_tiling(batch, tile_b):
    """Batch padded only to a multiple of 8; >=2 grid steps when possible."""
    b_pad = _round_up(max(batch, 8), 8)
    tb = min(tile_b, b_pad)
    # With only one grid step, one of v7x's two TensorCores would idle.
    if b_pad >= 16 and pl.cdiv(b_pad, tb) < 2:
        tb = _round_up(pl.cdiv(b_pad, 2), 8)
    n_tiles = pl.cdiv(b_pad, tb)  # last tile may be partial (writes are masked)
    return b_pad, tb, n_tiles


@functools.partial(jax.jit, static_argnames=("out_dim", "tile_b"))
def mlp_forward_pallas(x, params_padded, *, out_dim, tile_b=1024):
    """Fused classifier forward.

    x:             (B, D0) f32, un-padded.
    params_padded: list of (w_pad, b_pad); w0 rows padded to mult-of-8, all
                   output dims padded to mult-of-128 (zero padding -> exact).
    out_dim:       true (un-padded) output feature count.
    """
    B, D0 = x.shape
    num_layers = len(params_padded)
    d0_pad = params_padded[0][0].shape[0]      # layer-0 K (multiple of 8)
    dlast_pad = params_padded[-1][0].shape[1]  # output lanes (multiple of 128)

    b_pad, tb, n_tiles = _choose_batch_tiling(B, tile_b)

    # Pad only when strictly necessary; under jit this fuses (no eager copy).
    if b_pad != B or d0_pad != D0:
        x_in = jnp.zeros((b_pad, d0_pad), x.dtype).at[:B, :D0].set(x)
    else:
        x_in = x

    # x tiled over the batch; weights/biases constant-indexed (VMEM resident).
    in_specs = [pl.BlockSpec((tb, d0_pad), lambda i: (i, 0))]
    flat_params = []
    for (w, b) in params_padded:
        din_p, dout_p = w.shape
        in_specs.append(pl.BlockSpec((din_p, dout_p), lambda i: (0, 0)))
        in_specs.append(pl.BlockSpec((1, dout_p), lambda i: (0, 0)))
        flat_params.extend([w, b])

    kernel = functools.partial(_mlp_kernel, num_layers=num_layers)
    out_pad = pl.pallas_call(
        kernel,
        out_shape=jax.ShapeDtypeStruct((b_pad, dlast_pad), jnp.float32),
        grid=(n_tiles,),
        in_specs=in_specs,
        out_specs=pl.BlockSpec((tb, dlast_pad), lambda i: (i, 0)),
        compiler_params=pltpu.CompilerParams(
            dimension_semantics=("parallel",)
        ),
    )(x_in, *flat_params)

    # Under jit this slice fuses with the kernel output.
    return out_pad[:B, :out_dim]


class Classifier:
    """JAX/Pallas port of the PyTorch Classifier.

    Layers: Linear(dims[0]->dims[1]), ..., Linear(dims[-1] -> classes-1);
    forward = chained Linears (no intermediate activation) + final sigmoid.
    Weights stored (D_in, D_out) (transposed vs nn.Linear) and zero-padded.
    """

    def __init__(self, classifier_dims, classes, key, *,
                 collapse=False, use_bf16=False):
        dims = list(classifier_dims)
        layer_dims = [(dims[i], dims[i + 1]) for i in range(len(dims) - 1)]
        layer_dims.append((dims[-1], classes - 1))
        self.out_dim = classes - 1
        self.in_dim = dims[0]

        params = []
        prev_pad = _round_up(dims[0], 8)  # layer-0 K only needs sublane align
        for (din, dout) in layer_dims:
            key, wk, bk = jax.random.split(key, 3)
            # nn.Linear-style init: U(-1/sqrt(fan_in), +1/sqrt(fan_in))
            bound = 1.0 / math.sqrt(din)
            w = jax.random.uniform(wk, (din, dout), jnp.float32, -bound, bound)
            b = jax.random.uniform(bk, (1, dout), jnp.float32, -bound, bound)
            din_p = prev_pad
            dout_p = _round_up(dout, 128)  # lane-dense activations & output
            w_pad = jnp.zeros((din_p, dout_p), jnp.float32).at[:din, :dout].set(w)
            b_pad = jnp.zeros((1, dout_p), jnp.float32).at[:, :dout].set(b)
            params.append((w_pad, b_pad))
            prev_pad = dout_p

        if collapse:
            # No nonlinearity between the Linears -> fold into one affine map.
            w_eff, b_eff = params[0]
            for (w, b) in params[1:]:
                b_eff = b_eff @ w + b
                w_eff = w_eff @ w
            params = [(w_eff, b_eff)]

        if use_bf16:
            params = [(w.astype(jnp.bfloat16), b.astype(jnp.bfloat16))
                      for (w, b) in params]

        self.params_padded = params

    def __call__(self, x, *, tile_b=1024):
        return mlp_forward_pallas(x, self.params_padded,
                                  out_dim=self.out_dim, tile_b=tile_b)


if __name__ == "__main__":
    key = jax.random.PRNGKey(0)
    key, pkey, xkey, x2key = jax.random.split(key, 4)

    classifier_dims = [32, 64, 32]  # classifier MLP dims
    classes = 5                     # output dim = classes - 1 = 4
    batch = 8

    model = Classifier(classifier_dims, classes, pkey)
    x = jax.random.normal(xkey, (batch, classifier_dims[0]), jnp.float32)

    out = jax.block_until_ready(model(x))
    assert out.shape == (batch, classes - 1)
    assert bool(jnp.all((out >= 0.0) & (out <= 1.0)))

    # Plain-JAX reference with the same padded f32 params, same layer order.
    def ref_forward(xv, params):
        h = xv
        for (w, b) in params:
            h = h @ w[: h.shape[1]] + b
        return jax.nn.sigmoid(h)

    ref = ref_forward(x, model.params_padded)[:, : classes - 1]
    assert bool(jnp.allclose(out, ref, atol=1e-5, rtol=1e-5))

    # Exercise the multi-tile / partial-last-tile batch path (b_pad=24, tb=16).
    x2 = jax.random.normal(x2key, (20, classifier_dims[0]), jnp.float32)
    out2 = jax.block_until_ready(model(x2))
    ref2 = ref_forward(x2, model.params_padded)[:, : classes - 1]
    assert out2.shape == (20, classes - 1)
    assert bool(jnp.allclose(out2, ref2, atol=1e-5, rtol=1e-5))

    # Collapsed (single-matmul) mode: same weights, f32-ulp level differences.
    model_c = Classifier(classifier_dims, classes, pkey, collapse=True)
    out_c = jax.block_until_ready(model_c(x))
    assert bool(jnp.allclose(out_c, ref, atol=1e-4, rtol=1e-4))

    print("KERNEL_OK")
</pallas_src>

<mosaic_0001>
module attributes {stable_mosaic.version = 11 : i64} {
  func.func @_mlp_kernel(%arg0: i32, %arg1: memref<8x32xf32, #tpu.memory_space<vmem>>, %arg2: memref<32x128xf32, #tpu.memory_space<vmem>>, %arg3: memref<1x128xf32, #tpu.memory_space<vmem>>, %arg4: memref<128x128xf32, #tpu.memory_space<vmem>>, %arg5: memref<1x128xf32, #tpu.memory_space<vmem>>, %arg6: memref<128x128xf32, #tpu.memory_space<vmem>>, %arg7: memref<1x128xf32, #tpu.memory_space<vmem>>, %arg8: memref<8x128xf32, #tpu.memory_space<vmem>>) attributes {dimension_semantics = [#tpu.dimension_semantics<parallel>], iteration_bounds = array<i64: 1>, scalar_prefetch = 0 : i64, scratch_operands = 0 : i64, tpu.core_type = #tpu.core_type<tc>, window_params = [{transform_indices = @transform_0, window_bounds = array<i64: 8, 32>}, {pipeline_mode = #tpu.pipeline_mode<synchronous>, transform_indices = @transform_1, window_bounds = array<i64: 32, 128>}, {pipeline_mode = #tpu.pipeline_mode<synchronous>, transform_indices = @transform_2, window_bounds = array<i64: 1, 128>}, {pipeline_mode = #tpu.pipeline_mode<synchronous>, transform_indices = @transform_3, window_bounds = array<i64: 128, 128>}, {pipeline_mode = #tpu.pipeline_mode<synchronous>, transform_indices = @transform_4, window_bounds = array<i64: 1, 128>}, {pipeline_mode = #tpu.pipeline_mode<synchronous>, transform_indices = @transform_5, window_bounds = array<i64: 128, 128>}, {pipeline_mode = #tpu.pipeline_mode<synchronous>, transform_indices = @transform_6, window_bounds = array<i64: 1, 128>}, {transform_indices = @transform_7, window_bounds = array<i64: 8, 128>}]} {
    %c0 = arith.constant 0 : index
    %c0_0 = arith.constant 0 : index
    %0 = vector.load %arg1[%c0, %c0_0] : memref<8x32xf32, #tpu.memory_space<vmem>>, vector<8x32xf32>
    %c0_1 = arith.constant 0 : index
    %c0_2 = arith.constant 0 : index
    %1 = vector.load %arg2[%c0_1, %c0_2] : memref<32x128xf32, #tpu.memory_space<vmem>>, vector<32x128xf32>
    %c0_3 = arith.constant 0 : index
    %c0_4 = arith.constant 0 : index
    %2 = vector.load %arg3[%c0_3, %c0_4] : memref<1x128xf32, #tpu.memory_space<vmem>>, vector<1x128xf32>
    %cst = arith.constant dense<0.000000e+00> : vector<8x128xf32>
    %3 = tpu.matmul %0, %1, %cst {dimension_numbers = #tpu.dot_dimension_numbers<[1], [0], [0], [1], [0, 0, 1, 1], [], []>} : vector<8x32xf32>, vector<32x128xf32>, vector<8x128xf32> -> vector<8x128xf32>
    %4 = vector.broadcast %2 : vector<1x128xf32> to vector<8x128xf32>
    %5 = arith.addf %3, %4 : vector<8x128xf32>
    %c0_5 = arith.constant 0 : index
    %c0_6 = arith.constant 0 : index
    %6 = vector.load %arg4[%c0_5, %c0_6] : memref<128x128xf32, #tpu.memory_space<vmem>>, vector<128x128xf32>
    %c0_7 = arith.constant 0 : index
    %c0_8 = arith.constant 0 : index
    %7 = vector.load %arg5[%c0_7, %c0_8] : memref<1x128xf32, #tpu.memory_space<vmem>>, vector<1x128xf32>
    %cst_9 = arith.constant dense<0.000000e+00> : vector<8x128xf32>
    %8 = tpu.matmul %5, %6, %cst_9 {dimension_numbers = #tpu.dot_dimension_numbers<[1], [0], [0], [1], [0, 0, 1, 1], [], []>} : vector<8x128xf32>, vector<128x128xf32>, vector<8x128xf32> -> vector<8x128xf32>
    %9 = vector.broadcast %7 : vector<1x128xf32> to vector<8x128xf32>
    %10 = arith.addf %8, %9 : vector<8x128xf32>
    %c0_10 = arith.constant 0 : index
    %c0_11 = arith.constant 0 : index
    %11 = vector.load %arg6[%c0_10, %c0_11] : memref<128x128xf32, #tpu.memory_space<vmem>>, vector<128x128xf32>
    %c0_12 = arith.constant 0 : index
    %c0_13 = arith.constant 0 : index
    %12 = vector.load %arg7[%c0_12, %c0_13] : memref<1x128xf32, #tpu.memory_space<vmem>>, vector<1x128xf32>
    %cst_14 = arith.constant dense<0.000000e+00> : vector<8x128xf32>
    %13 = tpu.matmul %10, %11, %cst_14 {dimension_numbers = #tpu.dot_dimension_numbers<[1], [0], [0], [1], [0, 0, 1, 1], [], []>} : vector<8x128xf32>, vector<128x128xf32>, vector<8x128xf32> -> vector<8x128xf32>
    %14 = vector.broadcast %12 : vector<1x128xf32> to vector<8x128xf32>
    %15 = arith.addf %13, %14 : vector<8x128xf32>
    %16 = arith.negf %15 : vector<8x128xf32>
    %17 = math.exp %16 : vector<8x128xf32>
    %cst_15 = arith.constant 1.000000e+00 : f32
    %18 = vector.broadcast %cst_15 : f32 to vector<8x128xf32>
    %19 = arith.addf %18, %17 : vector<8x128xf32>
    %20 = arith.divf %18, %19 : vector<8x128xf32>
    %c0_16 = arith.constant 0 : index
    %c0_17 = arith.constant 0 : index
    %21 = vector.load %arg8[%c0_16, %c0_17] : memref<8x128xf32, #tpu.memory_space<vmem>>, vector<8x128xf32>
    tpu.vector_store %arg8[%c0_16, %c0_17], %20 {strides = array<i32>} : memref<8x128xf32, #tpu.memory_space<vmem>>, vector<8x128xf32>,
    return
  }
  func.func @transform_0(%arg0: i32) -> (i32, i32) {
    %c0_i32 = arith.constant 0 : i32
    %c0_i32_0 = arith.constant 0 : i32
    return %arg0, %c0_i32 : i32, i32
  }
  func.func @transform_1(%arg0: i32) -> (i32, i32) {
    %c0_i32 = arith.constant 0 : i32
    %c0_i32_0 = arith.constant 0 : i32
    %c0_i32_1 = arith.constant 0 : i32
    return %c0_i32, %c0_i32_0 : i32, i32
  }
  func.func @transform_2(%arg0: i32) -> (i32, i32) {
    %c0_i32 = arith.constant 0 : i32
    %c0_i32_0 = arith.constant 0 : i32
    %c0_i32_1 = arith.constant 0 : i32
    return %c0_i32, %c0_i32_0 : i32, i32
  }
  func.func @transform_3(%arg0: i32) -> (i32, i32) {
    %c0_i32 = arith.constant 0 : i32
    %c0_i32_0 = arith.constant 0 : i32
    %c0_i32_1 = arith.constant 0 : i32
    return %c0_i32, %c0_i32_0 : i32, i32
  }
  func.func @transform_4(%arg0: i32) -> (i32, i32) {
    %c0_i32 = arith.constant 0 : i32
    %c0_i32_0 = arith.constant 0 : i32
    %c0_i32_1 = arith.constant 0 : i32
    return %c0_i32, %c0_i32_0 : i32, i32
  }
  func.func @transform_5(%arg0: i32) -> (i32, i32) {
    %c0_i32 = arith.constant 0 : i32
    %c0_i32_0 = arith.constant 0 : i32
    %c0_i32_1 = arith.constant 0 : i32
    return %c0_i32, %c0_i32_0 : i32, i32
  }
  func.func @transform_6(%arg0: i32) -> (i32, i32) {
    %c0_i32 = arith.constant 0 : i32
    %c0_i32_0 = arith.constant 0 : i32
    %c0_i32_1 = arith.constant 0 : i32
    return %c0_i32, %c0_i32_0 : i32, i32
  }
  func.func @transform_7(%arg0: i32) -> (i32, i32) {
    %c0_i32 = arith.constant 0 : i32
    %c0_i32_0 = arith.constant 0 : i32
    return %arg0, %c0_i32 : i32, i32
  }
}

</mosaic_0001>

<llo_original>
// kernel: mlp_forward_pallas.1
$region0: #{mlp_forward_pallas.1}
  #allocation0 [shape = 'u32[]', space=smem, size = 0x4, offset = 0x4, fixed_abs, tag = 'smem constant byte address 0x4 - core index']
  #allocation1 [shape = 'u32[144,128]{1,0:T(1,128)}', space=vmem, size = 0x12000, scoped, tag = 'internal scratch']
  %s0 = inlined_call_operand.hbm [shape: f32[8,32], index: 0, kind: input, shape index: {}]
  %s1 = inlined_call_operand.hbm [shape: f32[32,128], index: 1, kind: input, shape index: {}]
  %s2 = inlined_call_operand.vmem [shape: f32[1,128], index: 2, kind: input, shape index: {}]
  %s3 = inlined_call_operand.hbm [shape: f32[128,128], index: 3, kind: input, shape index: {}]
  %s4 = inlined_call_operand.vmem [shape: f32[1,128], index: 4, kind: input, shape index: {}]
  %s5 = inlined_call_operand.hbm [shape: f32[128,128], index: 5, kind: input, shape index: {}]
  %s6 = inlined_call_operand.vmem [shape: f32[1,128], index: 6, kind: input, shape index: {}]
  %s7 = inlined_call_operand.vmem [shape: f32[8,128], index: 7, kind: output, shape index: {}]
  %s8 = sld [smem:[#allocation0]]
  $region54: #{mlp_forward_pallas.1} parent=0
    _
  %s10 = ssub.s32 1, %s8
  %s11 = scalar_select 0, %s10, %s8
  $region1: #{mlp_forward_pallas.1} parent=0
    #allocation2 [shape = 'u8[4096]{0}', space=vmem, size = 0x1000, scoped, tag = 'input window, operand 0, single buffered']
    #allocation3 [shape = 's32[1]{0}', space=sflag, size = 0x4, scoped, tag = 'scoped memory for mlp_forward_pallas.1']
    #allocation4 [shape = 'u8[16384]{0}', space=vmem, size = 0x4000, scoped, tag = 'input window, operand 1, single buffered']
    #allocation5 [shape = 's32[1]{0}', space=sflag, size = 0x4, scoped, tag = 'scoped memory for mlp_forward_pallas.1']
    #allocation6 [shape = 'u8[65536]{0}', space=vmem, size = 0x10000, scoped, tag = 'input window, operand 3, single buffered']
    #allocation7 [shape = 'u8[65536]{0}', space=vmem, size = 0x10000, scoped, tag = 'input window, operand 5, single buffered']
    #allocation8 [shape = 's32[1]{0}', space=sflag, size = 0x4, scoped, tag = 'scoped memory for mlp_forward_pallas.1']
    %12 = vsyncpa [#allocation3], 0
    %13 = vsyncpa [#allocation5], 0
    %14 = vsyncpa [#allocation8], 0
    // Predicated region
    $region2: #{mlp_forward_pallas.1} parent=1 // pred_check
      _
    $region3: #{mlp_forward_pallas.1} parent=1 // pred_check_branch
      %16 = sbr.rel (0) target = $region5
    $region4: #{mlp_forward_pallas.1} parent=1 // pred_region
      %s18 = ssub.s32 128, 128
      %19 = vsyncadd [#allocation3], %s18
      %s21 = sshll.u32 [#allocation2], 4
      %s22 = int_to_ptr.vmem [resolvable:$true] %s21
      %24 = dma.hbm_to_vmem [thread:$0]  %s0, 128, %s22, [#allocation3]
    $region5: #{mlp_forward_pallas.1} parent=1 // pred_fallthru
      _
    // Predicated region
    $region6: #{mlp_forward_pallas.1} parent=1 // pred_check
      _
    $region7: #{mlp_forward_pallas.1} parent=1 // pred_check_branch
      %26 = sbr.rel (0) target = $region9
    $region8: #{mlp_forward_pallas.1} parent=1 // pred_region
      %s28 = ssub.s32 512, 512
      %29 = vsyncadd [#allocation5], %s28
      %s30 = sshll.u32 [#allocation4], 4
      %s31 = int_to_ptr.vmem [resolvable:$true] %s30
      %36 = dma.hbm_to_vmem [thread:$0]  %s1, 512, %s31, [#allocation5], 128, 128, 8
    $region9: #{mlp_forward_pallas.1} parent=1 // pred_fallthru
      _
    // Predicated region
    $region10: #{mlp_forward_pallas.1} parent=1 // pred_check
      _
    $region11: #{mlp_forward_pallas.1} parent=1 // pred_check_branch
      %38 = sbr.rel (0) target = $region13
    $region12: #{mlp_forward_pallas.1} parent=1 // pred_region
      _
    $region13: #{mlp_forward_pallas.1} parent=1 // pred_fallthru
      _
    // Predicated region
    $region14: #{mlp_forward_pallas.1} parent=1 // pred_check
      _
    $region15: #{mlp_forward_pallas.1} parent=1 // pred_check_branch
      %40 = sbr.rel (0) target = $region17
    $region16: #{mlp_forward_pallas.1} parent=1 // pred_region
      %s42 = ssub.s32 2048, 2048
      %43 = vsyncadd [#allocation5], %s42
      %s44 = sshll.u32 [#allocation6], 4
      %s45 = int_to_ptr.vmem [resolvable:$true] %s44
      %50 = dma.hbm_to_vmem [thread:$0]  %s3, 2048, %s45, [#allocation5], 128, 128, 8
    $region17: #{mlp_forward_pallas.1} parent=1 // pred_fallthru
      _
    // Predicated region
    $region18: #{mlp_forward_pallas.1} parent=1 // pred_check
      _
    $region19: #{mlp_forward_pallas.1} parent=1 // pred_check_branch
      %52 = sbr.rel (0) target = $region21
    $region20: #{mlp_forward_pallas.1} parent=1 // pred_region
      _
    $region21: #{mlp_forward_pallas.1} parent=1 // pred_fallthru
      _
    // Predicated region
    $region22: #{mlp_forward_pallas.1} parent=1 // pred_check
      _
    $region23: #{mlp_forward_pallas.1} parent=1 // pred_check_branch
      %54 = sbr.rel (0) target = $region25
    $region24: #{mlp_forward_pallas.1} parent=1 // pred_region
      %s56 = ssub.s32 2048, 2048
      %57 = vsyncadd [#allocation8], %s56
      %s58 = sshll.u32 [#allocation7], 4
      %s59 = int_to_ptr.vmem [resolvable:$true] %s58
      %64 = dma.hbm_to_vmem [thread:$0]  %s5, 2048, %s59, [#allocation8], 128, 128, 8
    $region25: #{mlp_forward_pallas.1} parent=1 // pred_fallthru
      _
    // Predicated region
    $region26: #{mlp_forward_pallas.1} parent=1 // pred_check
      _
    $region27: #{mlp_forward_pallas.1} parent=1 // pred_check_branch
      %66 = sbr.rel (0) target = $region29
    $region28: #{mlp_forward_pallas.1} parent=1 // pred_region
      _
    $region29: #{mlp_forward_pallas.1} parent=1 // pred_fallthru
      _
    // Predicated region
    $region30: #{mlp_forward_pallas.1} parent=1 // pred_check
      _
    $region31: #{mlp_forward_pallas.1} parent=1 // pred_check_branch
      %68 = sbr.rel (0) target = $region33
    $region32: #{mlp_forward_pallas.1} parent=1 // pred_region
      %69 = dma.done [#allocation3], 128
    $region33: #{mlp_forward_pallas.1} parent=1 // pred_fallthru
      _
    // Predicated region
    $region34: #{mlp_forward_pallas.1} parent=1 // pred_check
      _
    $region35: #{mlp_forward_pallas.1} parent=1 // pred_check_branch
      %71 = sbr.rel (0) target = $region37
    $region36: #{mlp_forward_pallas.1} parent=1 // pred_region
      %72 = dma.done [#allocation5], 512
    $region37: #{mlp_forward_pallas.1} parent=1 // pred_fallthru
      _
    // Predicated region
    $region38: #{mlp_forward_pallas.1} parent=1 // pred_check
      _
    $region39: #{mlp_forward_pallas.1} parent=1 // pred_check_branch
      %74 = sbr.rel (0) target = $region41
    $region40: #{mlp_forward_pallas.1} parent=1 // pred_region
      %75 = dma.done [#allocation5], 2048
    $region41: #{mlp_forward_pallas.1} parent=1 // pred_fallthru
      _
    // Predicated region
    $region42: #{mlp_forward_pallas.1} parent=1 // pred_check
      _
    $region43: #{mlp_forward_pallas.1} parent=1 // pred_check_branch
      %77 = sbr.rel (0) target = $region45
    $region44: #{mlp_forward_pallas.1} parent=1 // pred_region
      %78 = dma.done [#allocation8], 2048
    $region45: #{mlp_forward_pallas.1} parent=1 // pred_fallthru
      _
    %v79 = vld [vmem:[#allocation2] sm:$0xff]
    %v80 = vld [vmem:[#allocation4] sm:$0xff]
    %v81 = vld [vmem:[#allocation4 + $0x8] sm:$0xff]
    %v82 = vld [vmem:[#allocation4 + $0x10] sm:$0xff]
    %v83 = vld [vmem:[#allocation4 + $0x18] sm:$0xff]
    %v84 = vld [vmem:[%s2] sm:$0x1]
    %v86 = vlaneseq
    %v87 = vshrl.u32 %v86, 7
    %v88 = vsub.s32 0, %v87
    %v89 = vrot.slane %v84, %v88
    %vm91 = vcmask 261120
    %v93 = vsel %vm91, %v79, 0
    %95 = vmatprep.subr.mxu0 0.0
    %96 = vmatpush1.msra.mxu0 %v80
    %97 = vmatprep.subr.mxu0 0.0
    %98 = vmatpush1.msra.mxu0 %v81
    %99 = vmatprep.subr.mxu0 0.0
    %100 = vmatpush1.msra.mxu0 %v82
    %101 = vmatprep.subr.mxu0 0.0
    %102 = vmatpush1.msra.mxu0 %v83
    %103 = vmatprep.subr.mxu0 0.0
    %104 = vmatpush1.msra.mxu0 0.0
    %105 = vmatprep.subr.mxu0 0.0
    %106 = vmatpush1.msra.mxu0 0.0
    %107 = vmatprep.subr.mxu0 0.0
    %108 = vmatpush1.msra.mxu0 0.0
    %109 = vmatprep.subr.mxu0 0.0
    %110 = vmatpush1.msra.mxu0 0.0
    %111 = vmatprep.subr.mxu0 0.0
    %112 = vmatpush1.msra.mxu0 0.0
    %113 = vmatprep.subr.mxu0 0.0
    %114 = vmatpush1.msra.mxu0 0.0
    %115 = vmatprep.subr.mxu0 0.0
    %116 = vmatpush1.msra.mxu0 0.0
    %117 = vmatprep.subr.mxu0 0.0
    %118 = vmatpush1.msra.mxu0 0.0
    %119 = vmatprep.subr.mxu0 0.0
    %120 = vmatpush1.msra.mxu0 0.0
    %121 = vmatprep.subr.mxu0 0.0
    %122 = vmatpush1.msra.mxu0 0.0
    %123 = vmatprep.subr.mxu0 0.0
    %124 = vmatpush1.msra.mxu0 0.0
    %125 = vmatprep.subr.mxu0 0.0
    %126 = vmatpush1.msra.mxu0 0.0
    %127 = vmatprep.subr.mxu0 0.0
    %128 = vmatpush1.msra.mxu0 0.0
    %129 = vmatprep.subr.mxu0 0.0
    %130 = vmatpush1.msra.mxu0 0.0
    %131 = vmatprep.subr.mxu0 0.0
    %132 = vmatpush1.msra.mxu0 0.0
    %133 = vmatprep.subr.mxu0 0.0
    %134 = vmatpush1.msra.mxu0 0.0
    %135 = vmatprep.subr.mxu0 0.0
    %136 = vmatpush1.msra.mxu0 0.0
    %137 = vmatprep.subr.mxu0 0.0
    %138 = vmatpush1.msra.mxu0 0.0
    %139 = vmatprep.subr.mxu0 0.0
    %140 = vmatpush1.msra.mxu0 0.0
    %141 = vmatprep.subr.mxu0 0.0
    %142 = vmatpush1.msra.mxu0 0.0
    %143 = vmatprep.subr.mxu0 0.0
    %144 = vmatpush1.msra.mxu0 0.0
    %145 = vmatprep.subr.mxu0 0.0
    %146 = vmatpush1.msra.mxu0 0.0
    %147 = vmatprep.subr.mxu0 0.0
    %148 = vmatpush1.msra.mxu0 0.0
    %149 = vmatprep.subr.mxu0 0.0
    %150 = vmatpush1.msra.mxu0 0.0
    %151 = vmatprep.subr.mxu0 0.0
    %152 = vmatpush1.msra.mxu0 0.0
    %153 = vmatprep.subr.mxu0 0.0
    %154 = vmatpush1.msra.mxu0 0.0
    %155 = vmatprep.subr.mxu0 0.0
    %156 = vmatpush1.msra.mxu0 0.0
    %157 = vmatprep.subr.mxu0 0.0
    %158 = vmatpush1.msra.mxu0 0.0
    %159 = vmatprep.mubr.f32.mxu0 0.0
    %160 = vmatmul.mubr.f32.gmra.mrb[0].mxu0 %v93
    %v161 = vpop.f32.mrb[0].mxu0
    %v162 = vadd.f32 %v89, %v161
    %v163 = vpop.f32.mrb[0].mxu0
    %164 = vdwg.mxu0
    %v165 = vld [vmem:[#allocation6] sm:$0xff]
    %v166 = vld [vmem:[#allocation6 + $0x8] sm:$0xff]
    %v167 = vld [vmem:[#allocation6 + $0x10] sm:$0xff]
    %v168 = vld [vmem:[#allocation6 + $0x18] sm:$0xff]
    %v169 = vld [vmem:[#allocation6 + $0x20] sm:$0xff]
    %v170 = vld [vmem:[#allocation6 + $0x28] sm:$0xff]
    %v171 = vld [vmem:[#allocation6 + $0x30] sm:$0xff]
    %v172 = vld [vmem:[#allocation6 + $0x38] sm:$0xff]
    %v173 = vld [vmem:[#allocation6 + $0x40] sm:$0xff]
    %v174 = vld [vmem:[#allocation6 + $0x48] sm:$0xff]
    %v175 = vld [vmem:[#allocation6 + $0x50] sm:$0xff]
    %v176 = vld [vmem:[#allocation6 + $0x58] sm:$0xff]
    %v177 = vld [vmem:[#allocation6 + $0x60] sm:$0xff]
    %v178 = vld [vmem:[#allocation6 + $0x68] sm:$0xff]
    %v179 = vld [vmem:[#allocation6 + $0x70] sm:$0xff]
    %v180 = vld [vmem:[#allocation6 + $0x78] sm:$0xff]
    %v181 = vld [vmem:[%s4] sm:$0x1]
    %v183 = vlaneseq
    %v184 = vshrl.u32 %v183, 7
    %v185 = vsub.s32 0, %v184
    %v186 = vrot.slane %v181, %v185
    %188 = vmatprep.subr.mxu0 0.0
    %189 = vmatpush1.msra.mxu0 %v165
    %190 = vmatprep.subr.mxu0 0.0
    %191 = vmatpush1.msra.mxu0 %v166
    %192 = vmatprep.subr.mxu0 0.0
    %193 = vmatpush1.msra.mxu0 %v167
    %194 = vmatprep.subr.mxu0 0.0
    %195 = vmatpush1.msra.mxu0 %v168
    %196 = vmatprep.subr.mxu0 0.0
    %197 = vmatpush1.msra.mxu0 %v169
    %198 = vmatprep.subr.mxu0 0.0
    %199 = vmatpush1.msra.mxu0 %v170
    %200 = vmatprep.subr.mxu0 0.0
    %201 = vmatpush1.msra.mxu0 %v171
    %202 = vmatprep.subr.mxu0 0.0
    %203 = vmatpush1.msra.mxu0 %v172
    %204 = vmatprep.subr.mxu0 0.0
    %205 = vmatpush1.msra.mxu0 %v173
    %206 = vmatprep.subr.mxu0 0.0
    %207 = vmatpush1.msra.mxu0 %v174
    %208 = vmatprep.subr.mxu0 0.0
    %209 = vmatpush1.msra.mxu0 %v175
    %210 = vmatprep.subr.mxu0 0.0
    %211 = vmatpush1.msra.mxu0 %v176
    %212 = vmatprep.subr.mxu0 0.0
    %213 = vmatpush1.msra.mxu0 %v177
    %214 = vmatprep.subr.mxu0 0.0
    %215 = vmatpush1.msra.mxu0 %v178
    %216 = vmatprep.subr.mxu0 0.0
    %217 = vmatpush1.msra.mxu0 %v179
    %218 = vmatprep.subr.mxu0 0.0
    %219 = vmatpush1.msra.mxu0 %v180
    %220 = vmatprep.subr.mxu0 0.0
    %221 = vmatpush1.msra.mxu0 0.0
    %222 = vmatprep.subr.mxu0 0.0
    %223 = vmatpush1.msra.mxu0 0.0
    %224 = vmatprep.subr.mxu0 0.0
    %225 = vmatpush1.msra.mxu0 0.0
    %226 = vmatprep.subr.mxu0 0.0
    %227 = vmatpush1.msra.mxu0 0.0
    %228 = vmatprep.subr.mxu0 0.0
    %229 = vmatpush1.msra.mxu0 0.0
    %230 = vmatprep.subr.mxu0 0.0
    %231 = vmatpush1.msra.mxu0 0.0
    %232 = vmatprep.subr.mxu0 0.0
    %233 = vmatpush1.msra.mxu0 0.0
    %234 = vmatprep.subr.mxu0 0.0
    %235 = vmatpush1.msra.mxu0 0.0
    %236 = vmatprep.subr.mxu0 0.0
    %237 = vmatpush1.msra.mxu0 0.0
    %238 = vmatprep.subr.mxu0 0.0
    %239 = vmatpush1.msra.mxu0 0.0
    %240 = vmatprep.subr.mxu0 0.0
    %241 = vmatpush1.msra.mxu0 0.0
    %242 = vmatprep.subr.mxu0 0.0
    %243 = vmatpush1.msra.mxu0 0.0
    %244 = vmatprep.subr.mxu0 0.0
    %245 = vmatpush1.msra.mxu0 0.0
    %246 = vmatprep.subr.mxu0 0.0
    %247 = vmatpush1.msra.mxu0 0.0
    %248 = vmatprep.subr.mxu0 0.0
    %249 = vmatpush1.msra.mxu0 0.0
    %250 = vmatprep.subr.mxu0 0.0
    %251 = vmatpush1.msra.mxu0 0.0
    %252 = vmatprep.mubr.f32.mxu0 0.0
    %253 = vmatmul.mubr.f32.gmra.mrb[0].mxu0 %v162
    %v254 = vpop.f32.mrb[0].mxu0
    %v255 = vadd.f32 %v186, %v254
    %v256 = vpop.f32.mrb[0].mxu0
    %257 = vdwg.mxu0
    %v258 = vld [vmem:[#allocation7] sm:$0xff]
    %v259 = vld [vmem:[#allocation7 + $0x8] sm:$0xff]
    %v260 = vld [vmem:[#allocation7 + $0x10] sm:$0xff]
    %v261 = vld [vmem:[#allocation7 + $0x18] sm:$0xff]
    %v262 = vld [vmem:[#allocation7 + $0x20] sm:$0xff]
    %v263 = vld [vmem:[#allocation7 + $0x28] sm:$0xff]
    %v264 = vld [vmem:[#allocation7 + $0x30] sm:$0xff]
    %v265 = vld [vmem:[#allocation7 + $0x38] sm:$0xff]
    %v266 = vld [vmem:[#allocation7 + $0x40] sm:$0xff]
    %v267 = vld [vmem:[#allocation7 + $0x48] sm:$0xff]
    %v268 = vld [vmem:[#allocation7 + $0x50] sm:$0xff]
    %v269 = vld [vmem:[#allocation7 + $0x58] sm:$0xff]
    %v270 = vld [vmem:[#allocation7 + $0x60] sm:$0xff]
    %v271 = vld [vmem:[#allocation7 + $0x68] sm:$0xff]
    %v272 = vld [vmem:[#allocation7 + $0x70] sm:$0xff]
    %v273 = vld [vmem:[#allocation7 + $0x78] sm:$0xff]
    %v274 = vld [vmem:[%s6] sm:$0x1]
    %v276 = vlaneseq
    %v277 = vshrl.u32 %v276, 7
    %v278 = vsub.s32 0, %v277
    %v279 = vrot.slane %v274, %v278
    %281 = vmatprep.subr.mxu0 0.0
    %282 = vmatpush1.msra.mxu0 %v258
    %283 = vmatprep.subr.mxu0 0.0
    %284 = vmatpush1.msra.mxu0 %v259
    %285 = vmatprep.subr.mxu0 0.0
    %286 = vmatpush1.msra.mxu0 %v260
    %287 = vmatprep.subr.mxu0 0.0
    %288 = vmatpush1.msra.mxu0 %v261
    %289 = vmatprep.subr.mxu0 0.0
    %290 = vmatpush1.msra.mxu0 %v262
    %291 = vmatprep.subr.mxu0 0.0
    %292 = vmatpush1.msra.mxu0 %v263
    %293 = vmatprep.subr.mxu0 0.0
    %294 = vmatpush1.msra.mxu0 %v264
    %295 = vmatprep.subr.mxu0 0.0
    %296 = vmatpush1.msra.mxu0 %v265
    %297 = vmatprep.subr.mxu0 0.0
    %298 = vmatpush1.msra.mxu0 %v266
    %299 = vmatprep.subr.mxu0 0.0
    %300 = vmatpush1.msra.mxu0 %v267
    %301 = vmatprep.subr.mxu0 0.0
    %302 = vmatpush1.msra.mxu0 %v268
    %303 = vmatprep.subr.mxu0 0.0
    %304 = vmatpush1.msra.mxu0 %v269
    %305 = vmatprep.subr.mxu0 0.0
    %306 = vmatpush1.msra.mxu0 %v270
    %307 = vmatprep.subr.mxu0 0.0
    %308 = vmatpush1.msra.mxu0 %v271
    %309 = vmatprep.subr.mxu0 0.0
    %310 = vmatpush1.msra.mxu0 %v272
    %311 = vmatprep.subr.mxu0 0.0
    %312 = vmatpush1.msra.mxu0 %v273
    %313 = vmatprep.subr.mxu0 0.0
    %314 = vmatpush1.msra.mxu0 0.0
    %315 = vmatprep.subr.mxu0 0.0
    %316 = vmatpush1.msra.mxu0 0.0
    %317 = vmatprep.subr.mxu0 0.0
    %318 = vmatpush1.msra.mxu0 0.0
    %319 = vmatprep.subr.mxu0 0.0
    %320 = vmatpush1.msra.mxu0 0.0
    %321 = vmatprep.subr.mxu0 0.0
    %322 = vmatpush1.msra.mxu0 0.0
    %323 = vmatprep.subr.mxu0 0.0
    %324 = vmatpush1.msra.mxu0 0.0
    %325 = vmatprep.subr.mxu0 0.0
    %326 = vmatpush1.msra.mxu0 0.0
    %327 = vmatprep.subr.mxu0 0.0
    %328 = vmatpush1.msra.mxu0 0.0
    %329 = vmatprep.subr.mxu0 0.0
    %330 = vmatpush1.msra.mxu0 0.0
    %331 = vmatprep.subr.mxu0 0.0
    %332 = vmatpush1.msra.mxu0 0.0
    %333 = vmatprep.subr.mxu0 0.0
    %334 = vmatpush1.msra.mxu0 0.0
    %335 = vmatprep.subr.mxu0 0.0
    %336 = vmatpush1.msra.mxu0 0.0
    %337 = vmatprep.subr.mxu0 0.0
    %338 = vmatpush1.msra.mxu0 0.0
    %339 = vmatprep.subr.mxu0 0.0
    %340 = vmatpush1.msra.mxu0 0.0
    %341 = vmatprep.subr.mxu0 0.0
    %342 = vmatpush1.msra.mxu0 0.0
    %343 = vmatprep.subr.mxu0 0.0
    %344 = vmatpush1.msra.mxu0 0.0
    %345 = vmatprep.mubr.f32.mxu0 0.0
    %346 = vmatmul.mubr.f32.gmra.mrb[0].mxu0 %v255
    %v347 = vpop.f32.mrb[0].mxu0
    %v348 = vadd.f32 %v279, %v347
    %v349 = vpop.f32.mrb[0].mxu0
    %350 = vdwg.mxu0
    %v351 = vxor.u32 %v348, 2147483648
    %v352 = vmul.f32 %v351, 1.442695
    %v353 = vpow.pop %v352
    %v354 = vadd.f32 %v353, 1.0
    %v355 = vrcp.pop %v354
    %v356 = vmul.f32 1.0, %v355
    %357 = vst [vmem:[%s7] sm:$0xff] %v356
    // Predicated region
    $region46: #{mlp_forward_pallas.1} parent=1 // pred_check
      _
    $region47: #{mlp_forward_pallas.1} parent=1 // pred_check_branch
      %359 = sbr.rel (0) target = $region49
    $region48: #{mlp_forward_pallas.1} parent=1 // pred_region
      _
    $region49: #{mlp_forward_pallas.1} parent=1 // pred_fallthru
      _
    // Predicated region
    $region50: #{mlp_forward_pallas.1} parent=1 // pred_check
      _
    $region51: #{mlp_forward_pallas.1} parent=1 // pred_check_branch
      %361 = sbr.rel (0) target = $region53
    $region52: #{mlp_forward_pallas.1} parent=1 // pred_region
      _
    $region53: #{mlp_forward_pallas.1} parent=1 // pred_fallthru
      _
    %362 = vsyncpa [#allocation3], 1
    %363 = vsyncpa [#allocation5], 1
    %364 = vsyncpa [#allocation8], 1

</llo_original>
